<compile_context>
chip_gen: v7x
topology: tpu7x:2x2x1
jax: 0.10.0
libtpu: 0.0.40
codegen_flags: <defaults>
</compile_context>

<pallas_src>
import functools
import math

import jax
import jax.numpy as jnp
from jax.experimental import pallas as pl
from jax.experimental.pallas import tpu as pltpu


def _vpu_contract(w_mat, z, n_par=4):
    """(M, C) x (C, HW) -> (M, HW) via full-lane VPU broadcast-FMAs.

    Uses up to n_par independent partial accumulators so the FMA chain exposes
    ILP across the 4 VALU slots instead of one serial dependency chain.
    """
    c = z.shape[0]
    n_par = max(1, min(n_par, c))
    parts = [w_mat[:, i:i + 1] * z[i:i + 1, :] for i in range(n_par)]
    for i in range(n_par, c):
        j = i % n_par
        parts[j] = parts[j] + w_mat[:, i:i + 1] * z[i:i + 1, :]
    acc = parts[0]
    for prt in parts[1:]:
        acc = acc + prt
    return acc


def _make_kernel(cin, rank, cout, k, h, w, block_n, mxu_min_k=64):
    p = k // 2
    hw = h * w
    ctot = cin + rank
    kk = k * k
    # out[:, j] = z[:, (j + s) % hw] == roll(z, -s); wrapped lanes coincide with
    # the mask-zeroed out-of-image taps (requires p < min(h, w), asserted).
    shifts = [(kh - p) * w + (kw - p) for kh in range(k) for kw in range(k)]

    def contract(w_mat, z):
        """(M, C) x (C, HW) -> (M, HW) accumulated in f32; MXU once C is non-toy."""
        if z.shape[0] >= mxu_min_k:
            return jnp.dot(w_mat, z, preferred_element_type=jnp.float32)
        return _vpu_contract(w_mat, z)

    def kernel(mask_ref, w_ref, a_ref, bias_ref, x_ref, o_ref):
        # Hoisted loads / broadcasts -- not re-read per batch item.
        w_mat = w_ref[...]                      # (cout, kk*ctot) fused tap weights
        a_mat = a_ref[...]                      # (rank, cin)     lora_A (1x1 conv)
        masks = mask_ref[...]                   # (kk, 1, hw)     SAME-pad tap masks
        bias_b = jnp.broadcast_to(bias_ref[...], (cout, hw))   # lane-broadcast bias

        # TODO(synk): switch to lax.fori_loop / grid-axis batching if block_n grows.
        for b in range(block_n):
            xv = x_ref[b].astype(jnp.float32)   # (cin, hw)   lane-dense
            yv = contract(a_mat, xv)            # (rank, hw)  lora_A output
            z = jnp.concatenate([xv, yv], axis=0)             # (ctot, hw)

            # One masked, lane-rolled window per KxK tap, stacked along the
            # contraction dim so the whole conv (main + scaled LoRA-B) is a
            # single (cout, kk*ctot) x (kk*ctot, hw) contraction.
            taps = []
            for t, s in enumerate(shifts):
                if s == 0:
                    taps.append(z)              # center tap: mask is all-ones
                else:
                    zt = pltpu.roll(z, shift=(-s) % hw, axis=1)
                    taps.append(zt * masks[t])
            zstack = jnp.concatenate(taps, axis=0)            # (kk*ctot, hw)

            acc = contract(w_mat, zstack)                     # (cout, hw) f32
            o_ref[b] = (acc + bias_b).astype(o_ref.dtype)

    return kernel


@functools.partial(jax.jit, static_argnames=("alpha",))
def conv_with_lora_pallas(x, w_main, bias, lora_a_w, lora_b_w, alpha=1.0):
    """x: (N, Cin, H, W); w_main: (Cout, Cin, K, K); bias: (Cout,);
    lora_a_w: (R, Cin, 1, 1); lora_b_w: (Cout, R, K, K)."""
    n, cin, h, w = x.shape
    rank = lora_a_w.shape[0]
    cout, _, k, _ = lora_b_w.shape
    p = k // 2
    hw = h * w
    ctot = cin + rank
    kk = k * k
    scale = float(alpha) / float(rank)

    # roll + mask zero-padding is exact only when wrapped lanes are always
    # out-of-image taps.
    assert p < min(h, w), "kernel requires kernel_size // 2 < min(H, W)"

    # ---- tiny constant prep (layout plumbing; alpha/rank folded into lora_B) ----
    a2 = lora_a_w.reshape(rank, cin).astype(jnp.float32)
    wm = jnp.transpose(w_main, (2, 3, 0, 1)).reshape(kk, cout, cin)
    wb = jnp.transpose(lora_b_w, (2, 3, 0, 1)).reshape(kk, cout, rank) * scale
    # (kk, cout, ctot) -> (cout, kk*ctot), matching the tap-major / channel-minor
    # row order of the in-kernel stacked operand.
    wcat = (jnp.concatenate([wm, wb], axis=-1)
            .transpose(1, 0, 2).reshape(cout, kk * ctot).astype(jnp.float32))
    bias_col = bias.reshape(cout, 1).astype(jnp.float32)

    # Per-tap validity masks implementing SAME zero padding; they also zero the
    # lanes wrapped by the circular lane roll.
    hh = jnp.arange(h)[:, None]
    ww = jnp.arange(w)[None, :]
    masks = []
    for kh in range(k):
        for kw in range(k):
            dh, dw = kh - p, kw - p
            m = ((hh + dh >= 0) & (hh + dh < h) & (ww + dw >= 0) & (ww + dw < w))
            masks.append(m.reshape(1, hw))
    mask_arr = jnp.stack(masks, axis=0).astype(jnp.float32)          # (kk, 1, hw)

    # Lane-dense layout: flatten spatial into the lane axis (free, row-major).
    x_flat = x.reshape(n, cin, hw)

    # Generation-aware batch blocking: >= 2 grid steps only on 2-TC parts.
    kind = jax.devices()[0].device_kind.lower()
    multi_tc = any(tag in kind for tag in ("v7", "v4", "v5p"))
    if multi_tc and n >= 2 and n % 2 == 0:
        block_n = n // 2
    else:
        block_n = n
    grid_n = n // block_n

    # Explicit VMEM budget: double-buffered in/out blocks + constants, generous
    # headroom, clamped well under v7x's 64 MiB physical VMEM.
    itemsize = x.dtype.itemsize
    block_bytes = 2 * block_n * (cin + cout) * hw * itemsize
    const_bytes = 4 * (cout * kk * ctot + rank * cin + cout + kk * hw)
    vmem_limit = int(min(max(4 * (block_bytes + const_bytes), 8 << 20), 48 << 20))

    kernel = _make_kernel(cin, rank, cout, k, h, w, block_n)

    out_flat = pl.pallas_call(
        kernel,
        out_shape=jax.ShapeDtypeStruct((n, cout, hw), x.dtype),
        grid=(grid_n,),
        in_specs=[
            pl.BlockSpec((kk, 1, hw), lambda i: (0, 0, 0)),          # tap masks
            pl.BlockSpec((cout, kk * ctot), lambda i: (0, 0)),       # fused tap weights
            pl.BlockSpec((rank, cin), lambda i: (0, 0)),             # lora_A
            pl.BlockSpec((cout, 1), lambda i: (0, 0)),               # bias
            pl.BlockSpec((block_n, cin, hw), lambda i: (i, 0, 0)),   # x (lane-dense)
        ],
        out_specs=pl.BlockSpec((block_n, cout, hw), lambda i: (i, 0, 0)),
        compiler_params=pltpu.CompilerParams(
            dimension_semantics=("parallel",),
            vmem_limit_bytes=vmem_limit,
        ),
    )(mask_arr, wcat, a2, bias_col, x_flat)

    return out_flat.reshape(n, cout, h, w)     # free row-major reshape back to NCHW


def conv_with_lora_reference(x, w_main, bias, lora_a_w, lora_b_w, alpha=1.0):
    """Pure-JAX reference matching ConvWithLoRA.forward (SAME-padded base conv)."""
    rank = lora_a_w.shape[0]
    k = lora_b_w.shape[-1]
    p = k // 2
    dn = ("NCHW", "OIHW", "NCHW")
    main = jax.lax.conv_general_dilated(x, w_main, (1, 1), [(p, p), (p, p)],
                                        dimension_numbers=dn)
    main = main + bias[None, :, None, None]
    y = jax.lax.conv_general_dilated(x, lora_a_w, (1, 1), "VALID",
                                     dimension_numbers=dn)
    z = jax.lax.conv_general_dilated(y, lora_b_w, (1, 1), [(p, p), (p, p)],
                                     dimension_numbers=dn)
    return main + (alpha / rank) * z


if __name__ == "__main__":
    # Problem sizes (PyTorch NCHW conventions).
    N, CIN, H, W = 2, 4, 16, 16
    RANK, COUT, K = 4, 8, 3
    ALPHA = 1.0

    key = jax.random.PRNGKey(0)
    kx, kwm, kbi, ka, kb = jax.random.split(key, 5)

    x = jax.random.normal(kx, (N, CIN, H, W), dtype=jnp.float32)

    # Main conv weights / bias: PyTorch default init U(-1/sqrt(fan_in), 1/sqrt(fan_in)).
    bound_w = 1.0 / math.sqrt(CIN * K * K)
    w_main = jax.random.uniform(kwm, (COUT, CIN, K, K), jnp.float32,
                                minval=-bound_w, maxval=bound_w)
    bias = jax.random.uniform(kbi, (COUT,), jnp.float32,
                              minval=-bound_w, maxval=bound_w)

    # lora_A: kaiming_uniform_(a=sqrt(5)) => U(-1/sqrt(fan_in), 1/sqrt(fan_in)), fan_in=CIN.
    bound_a = 1.0 / math.sqrt(CIN)
    lora_a_w = jax.random.uniform(ka, (RANK, CIN, 1, 1), jnp.float32,
                                  minval=-bound_a, maxval=bound_a)
    # lora_B is zero-initialized in the PyTorch module (LoRA branch would be all
    # zeros); use nonzero values so the LoRA path is actually exercised.
    lora_b_w = 0.1 * jax.random.normal(kb, (COUT, RANK, K, K), dtype=jnp.float32)

    out = conv_with_lora_pallas(x, w_main, bias, lora_a_w, lora_b_w, alpha=ALPHA)
    out = jax.block_until_ready(out)

    ref = conv_with_lora_reference(x, w_main, bias, lora_a_w, lora_b_w, alpha=ALPHA)
    assert out.shape == (N, COUT, H, W), out.shape
    max_err = float(jnp.max(jnp.abs(out - ref)))
    assert jnp.allclose(out, ref, atol=1e-4, rtol=1e-4), max_err

    print("KERNEL_OK")
</pallas_src>

<mosaic_0001>
module attributes {stable_mosaic.version = 11 : i64} {
  func.func @kernel(%arg0: i32, %arg1: memref<9x1x256xf32, #tpu.memory_space<vmem>>, %arg2: memref<8x72xf32, #tpu.memory_space<vmem>>, %arg3: memref<4x4xf32, #tpu.memory_space<vmem>>, %arg4: memref<8x1xf32, #tpu.memory_space<vmem>>, %arg5: memref<2x4x256xf32, #tpu.memory_space<vmem>>, %arg6: memref<2x8x256xf32, #tpu.memory_space<vmem>>) attributes {dimension_semantics = [#tpu.dimension_semantics<parallel>], iteration_bounds = array<i64: 1>, scalar_prefetch = 0 : i64, scratch_operands = 0 : i64, tpu.core_type = #tpu.core_type<tc>, window_params = [{pipeline_mode = #tpu.pipeline_mode<synchronous>, transform_indices = @transform_0, window_bounds = array<i64: 9, 1, 256>}, {pipeline_mode = #tpu.pipeline_mode<synchronous>, transform_indices = @transform_1, window_bounds = array<i64: 8, 72>}, {pipeline_mode = #tpu.pipeline_mode<synchronous>, transform_indices = @transform_2, window_bounds = array<i64: 4, 4>}, {pipeline_mode = #tpu.pipeline_mode<synchronous>, transform_indices = @transform_3, window_bounds = array<i64: 8, 1>}, {transform_indices = @transform_4, window_bounds = array<i64: 2, 4, 256>}, {transform_indices = @transform_5, window_bounds = array<i64: 2, 8, 256>}]} {
    %c0 = arith.constant 0 : index
    %c0_0 = arith.constant 0 : index
    %0 = vector.load %arg2[%c0, %c0_0] : memref<8x72xf32, #tpu.memory_space<vmem>>, vector<8x72xf32>
    %c0_1 = arith.constant 0 : index
    %c0_2 = arith.constant 0 : index
    %1 = vector.load %arg3[%c0_1, %c0_2] : memref<4x4xf32, #tpu.memory_space<vmem>>, vector<4x4xf32>
    %c0_3 = arith.constant 0 : index
    %c0_4 = arith.constant 0 : index
    %c0_5 = arith.constant 0 : index
    %2 = vector.load %arg1[%c0_3, %c0_4, %c0_5] : memref<9x1x256xf32, #tpu.memory_space<vmem>>, vector<9x1x256xf32>
    %c0_6 = arith.constant 0 : index
    %c0_7 = arith.constant 0 : index
    %3 = vector.load %arg4[%c0_6, %c0_7] : memref<8x1xf32, #tpu.memory_space<vmem>>, vector<8x1xf32>
    %4 = vector.shape_cast %3 : vector<8x1xf32> to vector<8x1xf32>
    %5 = vector.broadcast %4 : vector<8x1xf32> to vector<8x256xf32>
    %c0_8 = arith.constant 0 : index
    %c0_9 = arith.constant 0 : index
    %c0_10 = arith.constant 0 : index
    %6 = vector.load %arg5[%c0_8, %c0_9, %c0_10] : memref<2x4x256xf32, #tpu.memory_space<vmem>>, vector<1x4x256xf32>
    %7 = vector.shape_cast %6 : vector<1x4x256xf32> to vector<4x256xf32>
    %8 = vector.extract_strided_slice %1 {offsets = [0, 0], sizes = [4, 1], strides = [1, 1]} : vector<4x4xf32> to vector<4x1xf32>
    %9 = vector.extract_strided_slice %7 {offsets = [0, 0], sizes = [1, 256], strides = [1, 1]} : vector<4x256xf32> to vector<1x256xf32>
    %10 = vector.broadcast %8 : vector<4x1xf32> to vector<4x256xf32>
    %11 = vector.broadcast %9 : vector<1x256xf32> to vector<4x256xf32>
    %12 = arith.mulf %10, %11 : vector<4x256xf32>
    %13 = vector.extract_strided_slice %1 {offsets = [0, 1], sizes = [4, 1], strides = [1, 1]} : vector<4x4xf32> to vector<4x1xf32>
    %14 = vector.extract_strided_slice %7 {offsets = [1, 0], sizes = [1, 256], strides = [1, 1]} : vector<4x256xf32> to vector<1x256xf32>
    %15 = vector.broadcast %13 : vector<4x1xf32> to vector<4x256xf32>
    %16 = vector.broadcast %14 : vector<1x256xf32> to vector<4x256xf32>
    %17 = arith.mulf %15, %16 : vector<4x256xf32>
    %18 = vector.extract_strided_slice %1 {offsets = [0, 2], sizes = [4, 1], strides = [1, 1]} : vector<4x4xf32> to vector<4x1xf32>
    %19 = vector.extract_strided_slice %7 {offsets = [2, 0], sizes = [1, 256], strides = [1, 1]} : vector<4x256xf32> to vector<1x256xf32>
    %20 = vector.broadcast %18 : vector<4x1xf32> to vector<4x256xf32>
    %21 = vector.broadcast %19 : vector<1x256xf32> to vector<4x256xf32>
    %22 = arith.mulf %20, %21 : vector<4x256xf32>
    %23 = vector.extract_strided_slice %1 {offsets = [0, 3], sizes = [4, 1], strides = [1, 1]} : vector<4x4xf32> to vector<4x1xf32>
    %24 = vector.extract_strided_slice %7 {offsets = [3, 0], sizes = [1, 256], strides = [1, 1]} : vector<4x256xf32> to vector<1x256xf32>
    %25 = vector.broadcast %23 : vector<4x1xf32> to vector<4x256xf32>
    %26 = vector.broadcast %24 : vector<1x256xf32> to vector<4x256xf32>
    %27 = arith.mulf %25, %26 : vector<4x256xf32>
    %28 = arith.addf %12, %17 : vector<4x256xf32>
    %29 = arith.addf %28, %22 : vector<4x256xf32>
    %30 = arith.addf %29, %27 : vector<4x256xf32>
    %31 = tpu.concatenate %7, %30 in 0 : vector<4x256xf32>, vector<4x256xf32> -> vector<8x256xf32>
    %c17_i32 = arith.constant 17 : i32
    %32 = tpu.dynamic_rotate %31 by %c17_i32 dim 1 : vector<8x256xf32>, i32 -> vector<8x256xf32>
    %33 = vector.extract_strided_slice %2 {offsets = [0, 0, 0], sizes = [1, 1, 256], strides = [1, 1, 1]} : vector<9x1x256xf32> to vector<1x1x256xf32>
    %34 = vector.shape_cast %33 : vector<1x1x256xf32> to vector<1x256xf32>
    %35 = vector.broadcast %34 : vector<1x256xf32> to vector<8x256xf32>
    %36 = arith.mulf %32, %35 : vector<8x256xf32>
    %c16_i32 = arith.constant 16 : i32
    %37 = tpu.dynamic_rotate %31 by %c16_i32 dim 1 : vector<8x256xf32>, i32 -> vector<8x256xf32>
    %38 = vector.extract_strided_slice %2 {offsets = [1, 0, 0], sizes = [1, 1, 256], strides = [1, 1, 1]} : vector<9x1x256xf32> to vector<1x1x256xf32>
    %39 = vector.shape_cast %38 : vector<1x1x256xf32> to vector<1x256xf32>
    %40 = vector.broadcast %39 : vector<1x256xf32> to vector<8x256xf32>
    %41 = arith.mulf %37, %40 : vector<8x256xf32>
    %c15_i32 = arith.constant 15 : i32
    %42 = tpu.dynamic_rotate %31 by %c15_i32 dim 1 : vector<8x256xf32>, i32 -> vector<8x256xf32>
    %43 = vector.extract_strided_slice %2 {offsets = [2, 0, 0], sizes = [1, 1, 256], strides = [1, 1, 1]} : vector<9x1x256xf32> to vector<1x1x256xf32>
    %44 = vector.shape_cast %43 : vector<1x1x256xf32> to vector<1x256xf32>
    %45 = vector.broadcast %44 : vector<1x256xf32> to vector<8x256xf32>
    %46 = arith.mulf %42, %45 : vector<8x256xf32>
    %c1_i32 = arith.constant 1 : i32
    %47 = tpu.dynamic_rotate %31 by %c1_i32 dim 1 : vector<8x256xf32>, i32 -> vector<8x256xf32>
    %48 = vector.extract_strided_slice %2 {offsets = [3, 0, 0], sizes = [1, 1, 256], strides = [1, 1, 1]} : vector<9x1x256xf32> to vector<1x1x256xf32>
    %49 = vector.shape_cast %48 : vector<1x1x256xf32> to vector<1x256xf32>
    %50 = vector.broadcast %49 : vector<1x256xf32> to vector<8x256xf32>
    %51 = arith.mulf %47, %50 : vector<8x256xf32>
    %c255_i32 = arith.constant 255 : i32
    %52 = tpu.dynamic_rotate %31 by %c255_i32 dim 1 : vector<8x256xf32>, i32 -> vector<8x256xf32>
    %53 = vector.extract_strided_slice %2 {offsets = [5, 0, 0], sizes = [1, 1, 256], strides = [1, 1, 1]} : vector<9x1x256xf32> to vector<1x1x256xf32>
    %54 = vector.shape_cast %53 : vector<1x1x256xf32> to vector<1x256xf32>
    %55 = vector.broadcast %54 : vector<1x256xf32> to vector<8x256xf32>
    %56 = arith.mulf %52, %55 : vector<8x256xf32>
    %c241_i32 = arith.constant 241 : i32
    %57 = tpu.dynamic_rotate %31 by %c241_i32 dim 1 : vector<8x256xf32>, i32 -> vector<8x256xf32>
    %58 = vector.extract_strided_slice %2 {offsets = [6, 0, 0], sizes = [1, 1, 256], strides = [1, 1, 1]} : vector<9x1x256xf32> to vector<1x1x256xf32>
    %59 = vector.shape_cast %58 : vector<1x1x256xf32> to vector<1x256xf32>
    %60 = vector.broadcast %59 : vector<1x256xf32> to vector<8x256xf32>
    %61 = arith.mulf %57, %60 : vector<8x256xf32>
    %c240_i32 = arith.constant 240 : i32
    %62 = tpu.dynamic_rotate %31 by %c240_i32 dim 1 : vector<8x256xf32>, i32 -> vector<8x256xf32>
    %63 = vector.extract_strided_slice %2 {offsets = [7, 0, 0], sizes = [1, 1, 256], strides = [1, 1, 1]} : vector<9x1x256xf32> to vector<1x1x256xf32>
    %64 = vector.shape_cast %63 : vector<1x1x256xf32> to vector<1x256xf32>
    %65 = vector.broadcast %64 : vector<1x256xf32> to vector<8x256xf32>
    %66 = arith.mulf %62, %65 : vector<8x256xf32>
    %c239_i32 = arith.constant 239 : i32
    %67 = tpu.dynamic_rotate %31 by %c239_i32 dim 1 : vector<8x256xf32>, i32 -> vector<8x256xf32>
    %68 = vector.extract_strided_slice %2 {offsets = [8, 0, 0], sizes = [1, 1, 256], strides = [1, 1, 1]} : vector<9x1x256xf32> to vector<1x1x256xf32>
    %69 = vector.shape_cast %68 : vector<1x1x256xf32> to vector<1x256xf32>
    %70 = vector.broadcast %69 : vector<1x256xf32> to vector<8x256xf32>
    %71 = arith.mulf %67, %70 : vector<8x256xf32>
    %72 = tpu.concatenate %36, %41, %46, %51, %31, %56, %61, %66, %71 in 0 : vector<8x256xf32>, vector<8x256xf32>, vector<8x256xf32>, vector<8x256xf32>, vector<8x256xf32>, vector<8x256xf32>, vector<8x256xf32>, vector<8x256xf32>, vector<8x256xf32> -> vector<72x256xf32>
    %cst = arith.constant dense<0.000000e+00> : vector<8x256xf32>
    %73 = tpu.matmul %0, %72, %cst {dimension_numbers = #tpu.dot_dimension_numbers<[1], [0], [0], [1], [0, 0, 1, 1], [], []>} : vector<8x72xf32>, vector<72x256xf32>, vector<8x256xf32> -> vector<8x256xf32>
    %74 = arith.addf %73, %5 : vector<8x256xf32>
    %c0_11 = arith.constant 0 : index
    %c0_12 = arith.constant 0 : index
    %c0_13 = arith.constant 0 : index
    %75 = vector.load %arg6[%c0_11, %c0_12, %c0_13] : memref<2x8x256xf32, #tpu.memory_space<vmem>>, vector<1x8x256xf32>
    %76 = vector.shape_cast %75 : vector<1x8x256xf32> to vector<8x256xf32>
    %77 = vector.shape_cast %74 : vector<8x256xf32> to vector<1x8x256xf32>
    tpu.vector_store %arg6[%c0_11, %c0_12, %c0_13], %77 {strides = array<i32>} : memref<2x8x256xf32, #tpu.memory_space<vmem>>, vector<1x8x256xf32>,
    %c1 = arith.constant 1 : index
    %c0_14 = arith.constant 0 : index
    %c0_15 = arith.constant 0 : index
    %78 = vector.load %arg5[%c1, %c0_14, %c0_15] : memref<2x4x256xf32, #tpu.memory_space<vmem>>, vector<1x4x256xf32>
    %79 = vector.shape_cast %78 : vector<1x4x256xf32> to vector<4x256xf32>
    %80 = vector.extract_strided_slice %1 {offsets = [0, 0], sizes = [4, 1], strides = [1, 1]} : vector<4x4xf32> to vector<4x1xf32>
    %81 = vector.extract_strided_slice %79 {offsets = [0, 0], sizes = [1, 256], strides = [1, 1]} : vector<4x256xf32> to vector<1x256xf32>
    %82 = vector.broadcast %80 : vector<4x1xf32> to vector<4x256xf32>
    %83 = vector.broadcast %81 : vector<1x256xf32> to vector<4x256xf32>
    %84 = arith.mulf %82, %83 : vector<4x256xf32>
    %85 = vector.extract_strided_slice %1 {offsets = [0, 1], sizes = [4, 1], strides = [1, 1]} : vector<4x4xf32> to vector<4x1xf32>
    %86 = vector.extract_strided_slice %79 {offsets = [1, 0], sizes = [1, 256], strides = [1, 1]} : vector<4x256xf32> to vector<1x256xf32>
    %87 = vector.broadcast %85 : vector<4x1xf32> to vector<4x256xf32>
    %88 = vector.broadcast %86 : vector<1x256xf32> to vector<4x256xf32>
    %89 = arith.mulf %87, %88 : vector<4x256xf32>
    %90 = vector.extract_strided_slice %1 {offsets = [0, 2], sizes = [4, 1], strides = [1, 1]} : vector<4x4xf32> to vector<4x1xf32>
    %91 = vector.extract_strided_slice %79 {offsets = [2, 0], sizes = [1, 256], strides = [1, 1]} : vector<4x256xf32> to vector<1x256xf32>
    %92 = vector.broadcast %90 : vector<4x1xf32> to vector<4x256xf32>
    %93 = vector.broadcast %91 : vector<1x256xf32> to vector<4x256xf32>
    %94 = arith.mulf %92, %93 : vector<4x256xf32>
    %95 = vector.extract_strided_slice %1 {offsets = [0, 3], sizes = [4, 1], strides = [1, 1]} : vector<4x4xf32> to vector<4x1xf32>
    %96 = vector.extract_strided_slice %79 {offsets = [3, 0], sizes = [1, 256], strides = [1, 1]} : vector<4x256xf32> to vector<1x256xf32>
    %97 = vector.broadcast %95 : vector<4x1xf32> to vector<4x256xf32>
    %98 = vector.broadcast %96 : vector<1x256xf32> to vector<4x256xf32>
    %99 = arith.mulf %97, %98 : vector<4x256xf32>
    %100 = arith.addf %84, %89 : vector<4x256xf32>
    %101 = arith.addf %100, %94 : vector<4x256xf32>
    %102 = arith.addf %101, %99 : vector<4x256xf32>
    %103 = tpu.concatenate %79, %102 in 0 : vector<4x256xf32>, vector<4x256xf32> -> vector<8x256xf32>
    %c17_i32_16 = arith.constant 17 : i32
    %104 = tpu.dynamic_rotate %103 by %c17_i32_16 dim 1 : vector<8x256xf32>, i32 -> vector<8x256xf32>
    %105 = vector.extract_strided_slice %2 {offsets = [0, 0, 0], sizes = [1, 1, 256], strides = [1, 1, 1]} : vector<9x1x256xf32> to vector<1x1x256xf32>
    %106 = vector.shape_cast %105 : vector<1x1x256xf32> to vector<1x256xf32>
    %107 = vector.broadcast %106 : vector<1x256xf32> to vector<8x256xf32>
    %108 = arith.mulf %104, %107 : vector<8x256xf32>
    %c16_i32_17 = arith.constant 16 : i32
    %109 = tpu.dynamic_rotate %103 by %c16_i32_17 dim 1 : vector<8x256xf32>, i32 -> vector<8x256xf32>
    %110 = vector.extract_strided_slice %2 {offsets = [1, 0, 0], sizes = [1, 1, 256], strides = [1, 1, 1]} : vector<9x1x256xf32> to vector<1x1x256xf32>
    %111 = vector.shape_cast %110 : vector<1x1x256xf32> to vector<1x256xf32>
    %112 = vector.broadcast %111 : vector<1x256xf32> to vector<8x256xf32>
    %113 = arith.mulf %109, %112 : vector<8x256xf32>
    %c15_i32_18 = arith.constant 15 : i32
    %114 = tpu.dynamic_rotate %103 by %c15_i32_18 dim 1 : vector<8x256xf32>, i32 -> vector<8x256xf32>
    %115 = vector.extract_strided_slice %2 {offsets = [2, 0, 0], sizes = [1, 1, 256], strides = [1, 1, 1]} : vector<9x1x256xf32> to vector<1x1x256xf32>
    %116 = vector.shape_cast %115 : vector<1x1x256xf32> to vector<1x256xf32>
    %117 = vector.broadcast %116 : vector<1x256xf32> to vector<8x256xf32>
    %118 = arith.mulf %114, %117 : vector<8x256xf32>
    %c1_i32_19 = arith.constant 1 : i32
    %119 = tpu.dynamic_rotate %103 by %c1_i32_19 dim 1 : vector<8x256xf32>, i32 -> vector<8x256xf32>
    %120 = vector.extract_strided_slice %2 {offsets = [3, 0, 0], sizes = [1, 1, 256], strides = [1, 1, 1]} : vector<9x1x256xf32> to vector<1x1x256xf32>
    %121 = vector.shape_cast %120 : vector<1x1x256xf32> to vector<1x256xf32>
    %122 = vector.broadcast %121 : vector<1x256xf32> to vector<8x256xf32>
    %123 = arith.mulf %119, %122 : vector<8x256xf32>
    %c255_i32_20 = arith.constant 255 : i32
    %124 = tpu.dynamic_rotate %103 by %c255_i32_20 dim 1 : vector<8x256xf32>, i32 -> vector<8x256xf32>
    %125 = vector.extract_strided_slice %2 {offsets = [5, 0, 0], sizes = [1, 1, 256], strides = [1, 1, 1]} : vector<9x1x256xf32> to vector<1x1x256xf32>
    %126 = vector.shape_cast %125 : vector<1x1x256xf32> to vector<1x256xf32>
    %127 = vector.broadcast %126 : vector<1x256xf32> to vector<8x256xf32>
    %128 = arith.mulf %124, %127 : vector<8x256xf32>
    %c241_i32_21 = arith.constant 241 : i32
    %129 = tpu.dynamic_rotate %103 by %c241_i32_21 dim 1 : vector<8x256xf32>, i32 -> vector<8x256xf32>
    %130 = vector.extract_strided_slice %2 {offsets = [6, 0, 0], sizes = [1, 1, 256], strides = [1, 1, 1]} : vector<9x1x256xf32> to vector<1x1x256xf32>
    %131 = vector.shape_cast %130 : vector<1x1x256xf32> to vector<1x256xf32>
    %132 = vector.broadcast %131 : vector<1x256xf32> to vector<8x256xf32>
    %133 = arith.mulf %129, %132 : vector<8x256xf32>
    %c240_i32_22 = arith.constant 240 : i32
    %134 = tpu.dynamic_rotate %103 by %c240_i32_22 dim 1 : vector<8x256xf32>, i32 -> vector<8x256xf32>
    %135 = vector.extract_strided_slice %2 {offsets = [7, 0, 0], sizes = [1, 1, 256], strides = [1, 1, 1]} : vector<9x1x256xf32> to vector<1x1x256xf32>
    %136 = vector.shape_cast %135 : vector<1x1x256xf32> to vector<1x256xf32>
    %137 = vector.broadcast %136 : vector<1x256xf32> to vector<8x256xf32>
    %138 = arith.mulf %134, %137 : vector<8x256xf32>
    %c239_i32_23 = arith.constant 239 : i32
    %139 = tpu.dynamic_rotate %103 by %c239_i32_23 dim 1 : vector<8x256xf32>, i32 -> vector<8x256xf32>
    %140 = vector.extract_strided_slice %2 {offsets = [8, 0, 0], sizes = [1, 1, 256], strides = [1, 1, 1]} : vector<9x1x256xf32> to vector<1x1x256xf32>
    %141 = vector.shape_cast %140 : vector<1x1x256xf32> to vector<1x256xf32>
    %142 = vector.broadcast %141 : vector<1x256xf32> to vector<8x256xf32>
    %143 = arith.mulf %139, %142 : vector<8x256xf32>
    %144 = tpu.concatenate %108, %113, %118, %123, %103, %128, %133, %138, %143 in 0 : vector<8x256xf32>, vector<8x256xf32>, vector<8x256xf32>, vector<8x256xf32>, vector<8x256xf32>, vector<8x256xf32>, vector<8x256xf32>, vector<8x256xf32>, vector<8x256xf32> -> vector<72x256xf32>
    %cst_24 = arith.constant dense<0.000000e+00> : vector<8x256xf32>
    %145 = tpu.matmul %0, %144, %cst_24 {dimension_numbers = #tpu.dot_dimension_numbers<[1], [0], [0], [1], [0, 0, 1, 1], [], []>} : vector<8x72xf32>, vector<72x256xf32>, vector<8x256xf32> -> vector<8x256xf32>
    %146 = arith.addf %145, %5 : vector<8x256xf32>
    %c1_25 = arith.constant 1 : index
    %c0_26 = arith.constant 0 : index
    %c0_27 = arith.constant 0 : index
    %147 = vector.load %arg6[%c1_25, %c0_26, %c0_27] : memref<2x8x256xf32, #tpu.memory_space<vmem>>, vector<1x8x256xf32>
    %148 = vector.shape_cast %147 : vector<1x8x256xf32> to vector<8x256xf32>
    %149 = vector.shape_cast %146 : vector<8x256xf32> to vector<1x8x256xf32>
    tpu.vector_store %arg6[%c1_25, %c0_26, %c0_27], %149 {strides = array<i32>} : memref<2x8x256xf32, #tpu.memory_space<vmem>>, vector<1x8x256xf32>,
    return
  }
  func.func @transform_0(%arg0: i32) -> (i32, i32, i32) {
    %c0_i32 = arith.constant 0 : i32
    %c0_i32_0 = arith.constant 0 : i32
    %c0_i32_1 = arith.constant 0 : i32
    %c0_i32_2 = arith.constant 0 : i32
    return %c0_i32, %c0_i32_0, %c0_i32_1 : i32, i32, i32
  }
  func.func @transform_1(%arg0: i32) -> (i32, i32) {
    %c0_i32 = arith.constant 0 : i32
    %c0_i32_0 = arith.constant 0 : i32
    %c0_i32_1 = arith.constant 0 : i32
    return %c0_i32, %c0_i32_0 : i32, i32
  }
  func.func @transform_2(%arg0: i32) -> (i32, i32) {
    %c0_i32 = arith.constant 0 : i32
    %c0_i32_0 = arith.constant 0 : i32
    %c0_i32_1 = arith.constant 0 : i32
    return %c0_i32, %c0_i32_0 : i32, i32
  }
  func.func @transform_3(%arg0: i32) -> (i32, i32) {
    %c0_i32 = arith.constant 0 : i32
    %c0_i32_0 = arith.constant 0 : i32
    %c0_i32_1 = arith.constant 0 : i32
    return %c0_i32, %c0_i32_0 : i32, i32
  }
  func.func @transform_4(%arg0: i32) -> (i32, i32, i32) {
    %c0_i32 = arith.constant 0 : i32
    %c0_i32_0 = arith.constant 0 : i32
    %c0_i32_1 = arith.constant 0 : i32
    return %arg0, %c0_i32, %c0_i32_0 : i32, i32, i32
  }
  func.func @transform_5(%arg0: i32) -> (i32, i32, i32) {
    %c0_i32 = arith.constant 0 : i32
    %c0_i32_0 = arith.constant 0 : i32
    %c0_i32_1 = arith.constant 0 : i32
    return %arg0, %c0_i32, %c0_i32_0 : i32, i32, i32
  }
}

</mosaic_0001>

<llo_original>
// kernel: conv_with_lora_pallas.1
$region0: #{conv_with_lora_pallas.1}
  #allocation0 [shape = 'u32[]', space=smem, size = 0x4, offset = 0x4, fixed_abs, tag = 'smem constant byte address 0x4 - core index']
  #allocation1 [shape = 'u32[144,128]{1,0:T(1,128)}', space=vmem, size = 0x12000, scoped, tag = 'internal scratch']
  %s0 = inlined_call_operand.vmem [shape: f32[9,1,256], index: 0, kind: input, shape index: {}]
  %s1 = inlined_call_operand.vmem [shape: f32[8,72], index: 1, kind: input, shape index: {}]
  %s2 = inlined_call_operand.vmem [shape: f32[4,4], index: 2, kind: input, shape index: {}]
  %s3 = inlined_call_operand.vmem [shape: f32[8,1], index: 3, kind: input, shape index: {}]
  %s4 = inlined_call_operand.vmem [shape: f32[2,4,256], index: 4, kind: input, shape index: {}]
  %s5 = inlined_call_operand.vmem [shape: f32[2,8,256], index: 5, kind: output, shape index: {}]
  %s6 = sld [smem:[#allocation0]]
  $region30: #{conv_with_lora_pallas.1} parent=0
    _
  %s8 = ssub.s32 1, %s6
  %s9 = scalar_select 0, %s8, %s6
  // Predicated region
  $region2: #{conv_with_lora_pallas.1} parent=0 // pred_check
    _
  $region3: #{conv_with_lora_pallas.1} parent=0 // pred_check_branch
    %11 = sbr.rel (0) target = $region5
  $region4: #{conv_with_lora_pallas.1} parent=0 // pred_region
    _
  $region5: #{conv_with_lora_pallas.1} parent=0 // pred_fallthru
    _
  // Predicated region
  $region6: #{conv_with_lora_pallas.1} parent=0 // pred_check
    _
  $region7: #{conv_with_lora_pallas.1} parent=0 // pred_check_branch
    %13 = sbr.rel (0) target = $region9
  $region8: #{conv_with_lora_pallas.1} parent=0 // pred_region
    _
  $region9: #{conv_with_lora_pallas.1} parent=0 // pred_fallthru
    _
  // Predicated region
  $region10: #{conv_with_lora_pallas.1} parent=0 // pred_check
    _
  $region11: #{conv_with_lora_pallas.1} parent=0 // pred_check_branch
    %15 = sbr.rel (0) target = $region13
  $region12: #{conv_with_lora_pallas.1} parent=0 // pred_region
    _
  $region13: #{conv_with_lora_pallas.1} parent=0 // pred_fallthru
    _
  // Predicated region
  $region14: #{conv_with_lora_pallas.1} parent=0 // pred_check
    _
  $region15: #{conv_with_lora_pallas.1} parent=0 // pred_check_branch
    %17 = sbr.rel (0) target = $region17
  $region16: #{conv_with_lora_pallas.1} parent=0 // pred_region
    _
  $region17: #{conv_with_lora_pallas.1} parent=0 // pred_fallthru
    _
  // Predicated region
  $region18: #{conv_with_lora_pallas.1} parent=0 // pred_check
    _
  $region19: #{conv_with_lora_pallas.1} parent=0 // pred_check_branch
    %19 = sbr.rel (0) target = $region21
  $region20: #{conv_with_lora_pallas.1} parent=0 // pred_region
    _
  $region21: #{conv_with_lora_pallas.1} parent=0 // pred_fallthru
    _
  %v20 = vld [vmem:[%s1] sm:$0xff]
  %v21 = vld [vmem:[%s2] sm:$0xf]
  %v22 = vld [vmem:[%s0] sm:$0x3]
  %v23 = vld [vmem:[%s0 + $0x2] sm:$0x3]
  %v24 = vld [vmem:[%s0 + $0x4] sm:$0x3]
  %v25 = vld [vmem:[%s0 + $0x6] sm:$0x3]
  %v26 = vld [vmem:[%s0 + $0xa] sm:$0x3]
  %v27 = vld [vmem:[%s0 + $0xc] sm:$0x3]
  %v28 = vld [vmem:[%s0 + $0xe] sm:$0x3]
  %v29 = vld [vmem:[%s0 + $0x10] sm:$0x3]
  %v30 = vld [vmem:[%s3] sm:$0xff]
  %32 = vset.pattern.permute.xlu0 0
  %33 = vperm.xlu0 %32, %v30
  %v34 = vpop.permute.xlu0 %33
  %v36 = vld [vmem:[%s4] sm:$0xff]
  %38 = vset.pattern.permute.xlu0 0
  %39 = vperm.xlu0 %38, %v21
  %v40 = vpop.permute.xlu0 %39
  %v43 = vlaneseq
  %v44 = vshrl.u32 %v43, 7
  %v45 = vsub.s32 0, %v44
  %v46 = vrot.slane %v36, %v45
  %v47 = vlaneseq
  %v48 = vshrl.u32 %v47, 7
  %v49 = vsub.s32 4, %v48
  %v50 = vrot.slane %v36, %v49
  %v53 = vlaneseq
  %v54 = vshrl.u32 %v53, 7
  %v55 = vsub.s32 0, %v54
  %v56 = vrot.slane %v46, %v55
  %v57 = vlaneseq
  %v58 = vshrl.u32 %v57, 7
  %v59 = vsub.s32 0, %v58
  %v60 = vrot.slane %v50, %v59
  %v61 = vmul.f32 %v40, %v56
  %v62 = vmul.f32 %v40, %v60
  %63 = vset.pattern.permute.xlu0 1
  %64 = vperm.xlu0 %63, %v21
  %v65 = vpop.permute.xlu0 %64
  %v67 = vlaneseq
  %v68 = vshrl.u32 %v67, 7
  %v69 = vsub.s32 1, %v68
  %v70 = vrot.slane %v36, %v69
  %v71 = vlaneseq
  %v72 = vshrl.u32 %v71, 7
  %v73 = vsub.s32 5, %v72
  %v74 = vrot.slane %v36, %v73
  %v77 = vlaneseq
  %v78 = vshrl.u32 %v77, 7
  %v79 = vsub.s32 1, %v78
  %v80 = vrot.slane %v70, %v79
  %v81 = vlaneseq
  %v82 = vshrl.u32 %v81, 7
  %v83 = vsub.s32 1, %v82
  %v84 = vrot.slane %v74, %v83
  %v85 = vmul.f32 %v65, %v80
  %v86 = vmul.f32 %v65, %v84
  %87 = vset.pattern.permute.xlu0 2
  %88 = vperm.xlu0 %87, %v21
  %v89 = vpop.permute.xlu0 %88
  %v91 = vlaneseq
  %v92 = vshrl.u32 %v91, 7
  %v93 = vsub.s32 2, %v92
  %v94 = vrot.slane %v36, %v93
  %v95 = vlaneseq
  %v96 = vshrl.u32 %v95, 7
  %v97 = vsub.s32 6, %v96
  %v98 = vrot.slane %v36, %v97
  %v101 = vlaneseq
  %v102 = vshrl.u32 %v101, 7
  %v103 = vsub.s32 2, %v102
  %v104 = vrot.slane %v94, %v103
  %v105 = vlaneseq
  %v106 = vshrl.u32 %v105, 7
  %v107 = vsub.s32 2, %v106
  %v108 = vrot.slane %v98, %v107
  %v109 = vmul.f32 %v89, %v104
  %v110 = vmul.f32 %v89, %v108
  %111 = vset.pattern.permute.xlu0 3
  %112 = vperm.xlu0 %111, %v21
  %v113 = vpop.permute.xlu0 %112
  %v115 = vlaneseq
  %v116 = vshrl.u32 %v115, 7
  %v117 = vsub.s32 3, %v116
  %v118 = vrot.slane %v36, %v117
  %v119 = vlaneseq
  %v120 = vshrl.u32 %v119, 7
  %v121 = vsub.s32 7, %v120
  %v122 = vrot.slane %v36, %v121
  %v125 = vlaneseq
  %v126 = vshrl.u32 %v125, 7
  %v127 = vsub.s32 3, %v126
  %v128 = vrot.slane %v118, %v127
  %v129 = vlaneseq
  %v130 = vshrl.u32 %v129, 7
  %v131 = vsub.s32 3, %v130
  %v132 = vrot.slane %v122, %v131
  %v133 = vmul.f32 %v113, %v128
  %v134 = vmul.f32 %v113, %v132
  %v135 = vadd.f32 %v61, %v85
  %v136 = vadd.f32 %v62, %v86
  %v137 = vadd.f32 %v135, %v109
  %v138 = vadd.f32 %v136, %v110
  %v139 = vadd.f32 %v137, %v133
  %v140 = vadd.f32 %v138, %v134
  %v141 = vcombine.high %v36, %v36
  %v145 = vrot.slane %v139, 4
  %v146 = vrot.slane %v140, 4
  %vm149 = vcmask 1043456
  %v150 = vsel %vm149, %v36, %v145
  %v151 = vsel %vm149, %v141, %v146
  %152 = vrot.lane.b32.xlu0 %v150, 17
  %v153 = vpop.permute.xlu0 %152
  %154 = vrot.lane.b32.xlu0 %v151, 17
  %v155 = vpop.permute.xlu0 %154
  %v156 = vlaneseq
  %v157 = vand.u32 %v156, 127
  %vm158 = vcmp.lt.s32.totalorder %v157, 17
  %v159 = vsel %vm158, %v153, %v155
  %v160 = vsel %vm158, %v155, %v153
  %v162 = vlaneseq
  %v163 = vshrl.u32 %v162, 7
  %v164 = vsub.s32 0, %v163
  %v165 = vrot.slane %v22, %v164
  %v166 = vlaneseq
  %v167 = vshrl.u32 %v166, 7
  %v168 = vsub.s32 1, %v167
  %v169 = vrot.slane %v22, %v168
  %v172 = vmul.f32 %v160, %v165
  %v173 = vmul.f32 %v159, %v169
  %174 = vrot.lane.b32.xlu0 %v150, 16
  %v175 = vpop.permute.xlu0 %174
  %176 = vrot.lane.b32.xlu0 %v151, 16
  %v177 = vpop.permute.xlu0 %176
  %vm178 = vcmp.lt.s32.totalorder %v157, 16
  %v179 = vsel %vm178, %v175, %v177
  %v180 = vsel %vm178, %v177, %v175
  %v182 = vlaneseq
  %v183 = vshrl.u32 %v182, 7
  %v184 = vsub.s32 0, %v183
  %v185 = vrot.slane %v23, %v184
  %v186 = vlaneseq
  %v187 = vshrl.u32 %v186, 7
  %v188 = vsub.s32 1, %v187
  %v189 = vrot.slane %v23, %v188
  %v192 = vmul.f32 %v180, %v185
  %v193 = vmul.f32 %v179, %v189
  %194 = vrot.lane.b32.xlu0 %v150, 15
  %v195 = vpop.permute.xlu0 %194
  %196 = vrot.lane.b32.xlu0 %v151, 15
  %v197 = vpop.permute.xlu0 %196
  %vm198 = vcmp.lt.s32.totalorder %v157, 15
  %v199 = vsel %vm198, %v195, %v197
  %v200 = vsel %vm198, %v197, %v195
  %v202 = vlaneseq
  %v203 = vshrl.u32 %v202, 7
  %v204 = vsub.s32 0, %v203
  %v205 = vrot.slane %v24, %v204
  %v206 = vlaneseq
  %v207 = vshrl.u32 %v206, 7
  %v208 = vsub.s32 1, %v207
  %v209 = vrot.slane %v24, %v208
  %v212 = vmul.f32 %v200, %v205
  %v213 = vmul.f32 %v199, %v209
  %214 = vrot.lane.b32.xlu0 %v150, 1
  %v215 = vpop.permute.xlu0 %214
  %216 = vrot.lane.b32.xlu0 %v151, 1
  %v217 = vpop.permute.xlu0 %216
  %vm218 = vcmp.lt.s32.totalorder %v157, 1
  %v219 = vsel %vm218, %v215, %v217
  %v220 = vsel %vm218, %v217, %v215
  %v222 = vlaneseq
  %v223 = vshrl.u32 %v222, 7
  %v224 = vsub.s32 0, %v223
  %v225 = vrot.slane %v25, %v224
  %v226 = vlaneseq
  %v227 = vshrl.u32 %v226, 7
  %v228 = vsub.s32 1, %v227
  %v229 = vrot.slane %v25, %v228
  %v232 = vmul.f32 %v220, %v225
  %v233 = vmul.f32 %v219, %v229
  %234 = vrot.lane.b32.xlu0 %v150, 127
  %v235 = vpop.permute.xlu0 %234
  %236 = vrot.lane.b32.xlu0 %v151, 127
  %v237 = vpop.permute.xlu0 %236
  %vm238 = vcmp.lt.s32.totalorder %v157, 127
  %v239 = vsel %vm238, %v235, %v237
  %v240 = vsel %vm238, %v237, %v235
  %v242 = vlaneseq
  %v243 = vshrl.u32 %v242, 7
  %v244 = vsub.s32 0, %v243
  %v245 = vrot.slane %v26, %v244
  %v246 = vlaneseq
  %v247 = vshrl.u32 %v246, 7
  %v248 = vsub.s32 1, %v247
  %v249 = vrot.slane %v26, %v248
  %v252 = vmul.f32 %v239, %v245
  %v253 = vmul.f32 %v240, %v249
  %254 = vrot.lane.b32.xlu0 %v150, 113
  %v255 = vpop.permute.xlu0 %254
  %256 = vrot.lane.b32.xlu0 %v151, 113
  %v257 = vpop.permute.xlu0 %256
  %vm258 = vcmp.lt.s32.totalorder %v157, 113
  %v259 = vsel %vm258, %v255, %v257
  %v260 = vsel %vm258, %v257, %v255
  %v262 = vlaneseq
  %v263 = vshrl.u32 %v262, 7
  %v264 = vsub.s32 0, %v263
  %v265 = vrot.slane %v27, %v264
  %v266 = vlaneseq
  %v267 = vshrl.u32 %v266, 7
  %v268 = vsub.s32 1, %v267
  %v269 = vrot.slane %v27, %v268
  %v272 = vmul.f32 %v259, %v265
  %v273 = vmul.f32 %v260, %v269
  %274 = vrot.lane.b32.xlu0 %v150, 112
  %v275 = vpop.permute.xlu0 %274
  %276 = vrot.lane.b32.xlu0 %v151, 112
  %v277 = vpop.permute.xlu0 %276
  %vm278 = vcmp.lt.s32.totalorder %v157, 112
  %v279 = vsel %vm278, %v275, %v277
  %v280 = vsel %vm278, %v277, %v275
  %v282 = vlaneseq
  %v283 = vshrl.u32 %v282, 7
  %v284 = vsub.s32 0, %v283
  %v285 = vrot.slane %v28, %v284
  %v286 = vlaneseq
  %v287 = vshrl.u32 %v286, 7
  %v288 = vsub.s32 1, %v287
  %v289 = vrot.slane %v28, %v288
  %v292 = vmul.f32 %v279, %v285
  %v293 = vmul.f32 %v280, %v289
  %294 = vrot.lane.b32.xlu0 %v150, 111
  %v295 = vpop.permute.xlu0 %294
  %296 = vrot.lane.b32.xlu0 %v151, 111
  %v297 = vpop.permute.xlu0 %296
  %vm298 = vcmp.lt.s32.totalorder %v157, 111
  %v299 = vsel %vm298, %v295, %v297
  %v300 = vsel %vm298, %v297, %v295
  %v302 = vlaneseq
  %v303 = vshrl.u32 %v302, 7
  %v304 = vsub.s32 0, %v303
  %v305 = vrot.slane %v29, %v304
  %v306 = vlaneseq
  %v307 = vshrl.u32 %v306, 7
  %v308 = vsub.s32 1, %v307
  %v309 = vrot.slane %v29, %v308
  %v312 = vmul.f32 %v299, %v305
  %v313 = vmul.f32 %v300, %v309
  %vm314 = vcmask 588800
  %v316 = vsel %vm314, %v20, 0
  %318 = vmatprep.subr.mxu0 %v173
  %319 = vmatpush1.msra.mxu0 %v172
  %320 = vmatprep.subr.mxu0 %v193
  %321 = vmatpush1.msra.mxu0 %v192
  %322 = vmatprep.subr.mxu0 %v213
  %323 = vmatpush1.msra.mxu0 %v212
  %324 = vmatprep.subr.mxu0 %v233
  %325 = vmatpush1.msra.mxu0 %v232
  %326 = vmatprep.subr.mxu0 %v151
  %327 = vmatpush1.msra.mxu0 %v150
  %328 = vmatprep.subr.mxu0 %v253
  %329 = vmatpush1.msra.mxu0 %v252
  %330 = vmatprep.subr.mxu0 %v273
  %331 = vmatpush1.msra.mxu0 %v272
  %332 = vmatprep.subr.mxu0 %v293
  %333 = vmatpush1.msra.mxu0 %v292
  %334 = vmatprep.subr.mxu0 %v313
  %335 = vmatpush1.msra.mxu0 %v312
  %336 = vmatprep.subr.mxu0 0.0
  %337 = vmatpush1.msra.mxu0 0.0
  %338 = vmatprep.subr.mxu0 0.0
  %339 = vmatpush1.msra.mxu0 0.0
  %340 = vmatprep.subr.mxu0 0.0
  %341 = vmatpush1.msra.mxu0 0.0
  %342 = vmatprep.subr.mxu0 0.0
  %343 = vmatpush1.msra.mxu0 0.0
  %344 = vmatprep.subr.mxu0 0.0
  %345 = vmatpush1.msra.mxu0 0.0
  %346 = vmatprep.subr.mxu0 0.0
  %347 = vmatpush1.msra.mxu0 0.0
  %348 = vmatprep.subr.mxu0 0.0
  %349 = vmatpush1.msra.mxu0 0.0
  %350 = vmatprep.subr.mxu0 0.0
  %351 = vmatpush1.msra.mxu0 0.0
  %352 = vmatprep.subr.mxu0 0.0
  %353 = vmatpush1.msra.mxu0 0.0
  %354 = vmatprep.subr.mxu0 0.0
  %355 = vmatpush1.msra.mxu0 0.0
  %356 = vmatprep.subr.mxu0 0.0
  %357 = vmatpush1.msra.mxu0 0.0
  %358 = vmatprep.subr.mxu0 0.0
  %359 = vmatpush1.msra.mxu0 0.0
  %360 = vmatprep.subr.mxu0 0.0
  %361 = vmatpush1.msra.mxu0 0.0
  %362 = vmatprep.subr.mxu0 0.0
  %363 = vmatpush1.msra.mxu0 0.0
  %364 = vmatprep.subr.mxu0 0.0
  %365 = vmatpush1.msra.mxu0 0.0
  %366 = vmatprep.subr.mxu0 0.0
  %367 = vmatpush1.msra.mxu0 0.0
  %368 = vmatprep.subr.mxu0 0.0
  %369 = vmatpush1.msra.mxu0 0.0
  %370 = vmatprep.subr.mxu0 0.0
  %371 = vmatpush1.msra.mxu0 0.0
  %372 = vmatprep.subr.mxu0 0.0
  %373 = vmatpush1.msra.mxu0 0.0
  %374 = vmatprep.subr.mxu0 0.0
  %375 = vmatpush1.msra.mxu0 0.0
  %376 = vmatprep.subr.mxu0 0.0
  %377 = vmatpush1.msra.mxu0 0.0
  %378 = vmatprep.subr.mxu0 0.0
  %379 = vmatpush1.msra.mxu0 0.0
  %380 = vmatprep.subr.mxu0 0.0
  %381 = vmatpush1.msra.mxu0 0.0
  %382 = vmatprep.mubr.f32.mxu0 0.0
  %383 = vmatmul.mubr.f32.gmra.mrb[0].mxu0 %v316
  %v384 = vpop.f32.mrb[0].mxu0
  %v385 = vadd.f32 %v34, %v384
  %v386 = vpop.f32.mrb[0].mxu0
  %v387 = vadd.f32 %v34, %v386
  %388 = vdwg.mxu0
  %389 = vst [vmem:[%s5] sm:$0xff] %v385
  %390 = vst [vmem:[%s5 + $0x8] sm:$0xff] %v387
  %s391 = scalar_lea.vmem %s4, 8
  %v392 = vld [vmem:[%s391] sm:$0xff]
  %v394 = vlaneseq
  %v395 = vshrl.u32 %v394, 7
  %v396 = vsub.s32 0, %v395
  %v397 = vrot.slane %v392, %v396
  %v398 = vlaneseq
  %v399 = vshrl.u32 %v398, 7
  %v400 = vsub.s32 4, %v399
  %v401 = vrot.slane %v392, %v400
  %v404 = vlaneseq
  %v405 = vshrl.u32 %v404, 7
  %v406 = vsub.s32 0, %v405
  %v407 = vrot.slane %v397, %v406
  %v408 = vlaneseq
  %v409 = vshrl.u32 %v408, 7
  %v410 = vsub.s32 0, %v409
  %v411 = vrot.slane %v401, %v410
  %v412 = vmul.f32 %v40, %v407
  %v413 = vmul.f32 %v40, %v411
  %v414 = vlaneseq
  %v415 = vshrl.u32 %v414, 7
  %v416 = vsub.s32 1, %v415
  %v417 = vrot.slane %v392, %v416
  %v418 = vlaneseq
  %v419 = vshrl.u32 %v418, 7
  %v420 = vsub.s32 5, %v419
  %v421 = vrot.slane %v392, %v420
  %v424 = vlaneseq
  %v425 = vshrl.u32 %v424, 7
  %v426 = vsub.s32 1, %v425
  %v427 = vrot.slane %v417, %v426
  %v428 = vlaneseq
  %v429 = vshrl.u32 %v428, 7
  %v430 = vsub.s32 1, %v429
  %v431 = vrot.slane %v421, %v430
  %v432 = vmul.f32 %v65, %v427
  %v433 = vmul.f32 %v65, %v431
  %v434 = vlaneseq
  %v435 = vshrl.u32 %v434, 7
  %v436 = vsub.s32 2, %v435
  %v437 = vrot.slane %v392, %v436
  %v438 = vlaneseq
  %v439 = vshrl.u32 %v438, 7
  %v440 = vsub.s32 6, %v439
  %v441 = vrot.slane %v392, %v440
  %v444 = vlaneseq
  %v445 = vshrl.u32 %v444, 7
  %v446 = vsub.s32 2, %v445
  %v447 = vrot.slane %v437, %v446
  %v448 = vlaneseq
  %v449 = vshrl.u32 %v448, 7
  %v450 = vsub.s32 2, %v449
  %v451 = vrot.slane %v441, %v450
  %v452 = vmul.f32 %v89, %v447
  %v453 = vmul.f32 %v89, %v451
  %v454 = vlaneseq
  %v455 = vshrl.u32 %v454, 7
  %v456 = vsub.s32 3, %v455
  %v457 = vrot.slane %v392, %v456
  %v458 = vlaneseq
  %v459 = vshrl.u32 %v458, 7
  %v460 = vsub.s32 7, %v459
  %v461 = vrot.slane %v392, %v460
  %v464 = vlaneseq
  %v465 = vshrl.u32 %v464, 7
  %v466 = vsub.s32 3, %v465
  %v467 = vrot.slane %v457, %v466
  %v468 = vlaneseq
  %v469 = vshrl.u32 %v468, 7
  %v470 = vsub.s32 3, %v469
  %v471 = vrot.slane %v461, %v470
  %v472 = vmul.f32 %v113, %v467
  %v473 = vmul.f32 %v113, %v471
  %v474 = vadd.f32 %v412, %v432
  %v475 = vadd.f32 %v413, %v433
  %v476 = vadd.f32 %v474, %v452
  %v477 = vadd.f32 %v475, %v453
  %v478 = vadd.f32 %v476, %v472
  %v479 = vadd.f32 %v477, %v473
  %v480 = vcombine.high %v392, %v392
  %v484 = vrot.slane %v478, 4
  %v485 = vrot.slane %v479, 4
  %v488 = vsel %vm149, %v392, %v484
  %v489 = vsel %vm149, %v480, %v485
  %490 = vrot.lane.b32.xlu0 %v488, 17
  %v491 = vpop.permute.xlu0 %490
  %492 = vrot.lane.b32.xlu0 %v489, 17
  %v493 = vpop.permute.xlu0 %492
  %v494 = vsel %vm158, %v491, %v493
  %v495 = vsel %vm158, %v493, %v491
  %v496 = vmul.f32 %v495, %v165
  %v497 = vmul.f32 %v494, %v169
  %498 = vrot.lane.b32.xlu0 %v488, 16
  %v499 = vpop.permute.xlu0 %498
  %500 = vrot.lane.b32.xlu0 %v489, 16
  %v501 = vpop.permute.xlu0 %500
  %v502 = vsel %vm178, %v499, %v501
  %v503 = vsel %vm178, %v501, %v499
  %v504 = vmul.f32 %v503, %v185
  %v505 = vmul.f32 %v502, %v189
  %506 = vrot.lane.b32.xlu0 %v488, 15
  %v507 = vpop.permute.xlu0 %506
  %508 = vrot.lane.b32.xlu0 %v489, 15
  %v509 = vpop.permute.xlu0 %508
  %v510 = vsel %vm198, %v507, %v509
  %v511 = vsel %vm198, %v509, %v507
  %v512 = vmul.f32 %v511, %v205
  %v513 = vmul.f32 %v510, %v209
  %514 = vrot.lane.b32.xlu0 %v488, 1
  %v515 = vpop.permute.xlu0 %514
  %516 = vrot.lane.b32.xlu0 %v489, 1
  %v517 = vpop.permute.xlu0 %516
  %v518 = vsel %vm218, %v515, %v517
  %v519 = vsel %vm218, %v517, %v515
  %v520 = vmul.f32 %v519, %v225
  %v521 = vmul.f32 %v518, %v229
  %522 = vrot.lane.b32.xlu0 %v488, 127
  %v523 = vpop.permute.xlu0 %522
  %524 = vrot.lane.b32.xlu0 %v489, 127
  %v525 = vpop.permute.xlu0 %524
  %v526 = vsel %vm238, %v523, %v525
  %v527 = vsel %vm238, %v525, %v523
  %v528 = vmul.f32 %v526, %v245
  %v529 = vmul.f32 %v527, %v249
  %530 = vrot.lane.b32.xlu0 %v488, 113
  %v531 = vpop.permute.xlu0 %530
  %532 = vrot.lane.b32.xlu0 %v489, 113
  %v533 = vpop.permute.xlu0 %532
  %v534 = vsel %vm258, %v531, %v533
  %v535 = vsel %vm258, %v533, %v531
  %v536 = vmul.f32 %v534, %v265
  %v537 = vmul.f32 %v535, %v269
  %538 = vrot.lane.b32.xlu0 %v488, 112
  %v539 = vpop.permute.xlu0 %538
  %540 = vrot.lane.b32.xlu0 %v489, 112
  %v541 = vpop.permute.xlu0 %540
  %v542 = vsel %vm278, %v539, %v541
  %v543 = vsel %vm278, %v541, %v539
  %v544 = vmul.f32 %v542, %v285
  %v545 = vmul.f32 %v543, %v289
  %546 = vrot.lane.b32.xlu0 %v488, 111
  %v547 = vpop.permute.xlu0 %546
  %548 = vrot.lane.b32.xlu0 %v489, 111
  %v549 = vpop.permute.xlu0 %548
  %v550 = vsel %vm298, %v547, %v549
  %v551 = vsel %vm298, %v549, %v547
  %v552 = vmul.f32 %v550, %v305
  %v553 = vmul.f32 %v551, %v309
  %554 = vmatprep.subr.mxu0 %v497
  %555 = vmatpush1.msra.mxu0 %v496
  %556 = vmatprep.subr.mxu0 %v505
  %557 = vmatpush1.msra.mxu0 %v504
  %558 = vmatprep.subr.mxu0 %v513
  %559 = vmatpush1.msra.mxu0 %v512
  %560 = vmatprep.subr.mxu0 %v521
  %561 = vmatpush1.msra.mxu0 %v520
  %562 = vmatprep.subr.mxu0 %v489
  %563 = vmatpush1.msra.mxu0 %v488
  %564 = vmatprep.subr.mxu0 %v529
  %565 = vmatpush1.msra.mxu0 %v528
  %566 = vmatprep.subr.mxu0 %v537
  %567 = vmatpush1.msra.mxu0 %v536
  %568 = vmatprep.subr.mxu0 %v545
  %569 = vmatpush1.msra.mxu0 %v544
  %570 = vmatprep.subr.mxu0 %v553
  %571 = vmatpush1.msra.mxu0 %v552
  %572 = vmatprep.subr.mxu0 0.0
  %573 = vmatpush1.msra.mxu0 0.0
  %574 = vmatprep.subr.mxu0 0.0
  %575 = vmatpush1.msra.mxu0 0.0
  %576 = vmatprep.subr.mxu0 0.0
  %577 = vmatpush1.msra.mxu0 0.0
  %578 = vmatprep.subr.mxu0 0.0
  %579 = vmatpush1.msra.mxu0 0.0
  %580 = vmatprep.subr.mxu0 0.0
  %581 = vmatpush1.msra.mxu0 0.0
  %582 = vmatprep.subr.mxu0 0.0
  %583 = vmatpush1.msra.mxu0 0.0
  %584 = vmatprep.subr.mxu0 0.0
  %585 = vmatpush1.msra.mxu0 0.0
  %586 = vmatprep.subr.mxu0 0.0
  %587 = vmatpush1.msra.mxu0 0.0
  %588 = vmatprep.subr.mxu0 0.0
  %589 = vmatpush1.msra.mxu0 0.0
  %590 = vmatprep.subr.mxu0 0.0
  %591 = vmatpush1.msra.mxu0 0.0
  %592 = vmatprep.subr.mxu0 0.0
  %593 = vmatpush1.msra.mxu0 0.0
  %594 = vmatprep.subr.mxu0 0.0
  %595 = vmatpush1.msra.mxu0 0.0
  %596 = vmatprep.subr.mxu0 0.0
  %597 = vmatpush1.msra.mxu0 0.0
  %598 = vmatprep.subr.mxu0 0.0
  %599 = vmatpush1.msra.mxu0 0.0
  %600 = vmatprep.subr.mxu0 0.0
  %601 = vmatpush1.msra.mxu0 0.0
  %602 = vmatprep.subr.mxu0 0.0
  %603 = vmatpush1.msra.mxu0 0.0
  %604 = vmatprep.subr.mxu0 0.0
  %605 = vmatpush1.msra.mxu0 0.0
  %606 = vmatprep.subr.mxu0 0.0
  %607 = vmatpush1.msra.mxu0 0.0
  %608 = vmatprep.subr.mxu0 0.0
  %609 = vmatpush1.msra.mxu0 0.0
  %610 = vmatprep.subr.mxu0 0.0
  %611 = vmatpush1.msra.mxu0 0.0
  %612 = vmatprep.subr.mxu0 0.0
  %613 = vmatpush1.msra.mxu0 0.0
  %614 = vmatprep.subr.mxu0 0.0
  %615 = vmatpush1.msra.mxu0 0.0
  %616 = vmatprep.subr.mxu0 0.0
  %617 = vmatpush1.msra.mxu0 0.0
  %618 = vmatprep.mubr.f32.mxu0 0.0
  %619 = vmatmul.mubr.f32.gmra.mrb[0].mxu0 %v316
  %v620 = vpop.f32.mrb[0].mxu0
  %v621 = vadd.f32 %v34, %v620
  %v622 = vpop.f32.mrb[0].mxu0
  %v623 = vadd.f32 %v34, %v622
  %624 = vdwg.mxu0
  %s625 = scalar_lea.vmem %s5, 16
  %626 = vst [vmem:[%s625] sm:$0xff] %v621
  %627 = vst [vmem:[%s625 + $0x8] sm:$0xff] %v623
  // Predicated region
  $region22: #{conv_with_lora_pallas.1} parent=0 // pred_check
    _
  $region23: #{conv_with_lora_pallas.1} parent=0 // pred_check_branch
    %629 = sbr.rel (0) target = $region25
  $region24: #{conv_with_lora_pallas.1} parent=0 // pred_region
    _
  $region25: #{conv_with_lora_pallas.1} parent=0 // pred_fallthru
    _
  // Predicated region
  $region26: #{conv_with_lora_pallas.1} parent=0 // pred_check
    _
  $region27: #{conv_with_lora_pallas.1} parent=0 // pred_check_branch
    %631 = sbr.rel (0) target = $region29
  $region28: #{conv_with_lora_pallas.1} parent=0 // pred_region
    _
  $region29: #{conv_with_lora_pallas.1} parent=0 // pred_fallthru
    _

</llo_original>
